<compile_context>
chip_gen: v7x
topology: tpu7x:2x2x1
jax: 0.10.0
libtpu: 0.0.40
codegen_flags: <defaults>
</compile_context>

<pallas_src>
import functools

import jax
import jax.numpy as jnp
from jax.experimental import pallas as pl
from jax.experimental.pallas import tpu as pltpu


def _round_up(x, m):
    return ((x + m - 1) // m) * m


def _sublane(itemsize):
    # sublane granularity: 8 rows for 32-bit, 16 for 16-bit, 32 for 8-bit
    return 8 * max(1, 4 // itemsize)


# ---------------------------------------------------------------------------
# Kernels
# ---------------------------------------------------------------------------
def _linear_kernel_single_k(x_ref, w_ref, b_ref, o_ref, *, compute_dtype):
    """K fits in one tile: plain matmul + bias, no accumulator / phases."""
    x = x_ref[...].astype(compute_dtype)          # in-kernel cast (VPU, hidden)
    acc = jnp.dot(x, w_ref[...], preferred_element_type=jnp.float32)
    o_ref[...] = (acc + b_ref[...]).astype(o_ref.dtype)


def _linear_kernel_tiled_k(x_ref, w_ref, b_ref, o_ref, acc_ref, *,
                           compute_dtype, tk, w_resident):
    """K tiled on the last ('arbitrary') grid axis, persistent f32 accumulator."""
    k = pl.program_id(2)

    @pl.when(k == 0)
    def _():
        acc_ref[...] = jnp.zeros_like(acc_ref)

    x = x_ref[...].astype(compute_dtype)
    if w_resident:
        # Whole (K_pad, N_pad) weight is VMEM-resident; take this K chunk.
        off = pl.multiple_of(k * tk, 128)
        w = w_ref[pl.ds(off, tk), :]
    else:
        w = w_ref[...]
    acc_ref[...] += jnp.dot(x, w, preferred_element_type=jnp.float32)

    @pl.when(k == pl.num_programs(2) - 1)
    def _():
        o_ref[...] = (acc_ref[...] + b_ref[...]).astype(o_ref.dtype)


# ---------------------------------------------------------------------------
# Wrapper
# ---------------------------------------------------------------------------
def linear_classifier_forward(x, weight, bias, *,
                              compute_dtype=jnp.bfloat16,
                              tm=512, tn_max=2048, tk_max=2048,
                              vmem_budget_bytes=40 << 20):
    """Forward pass of LinearClassifier (x.view(B,-1) @ weight.T + bias).

    x:       (B, ...) frozen features, flattened row-major to (B, dim).
    weight:  (num_labels, dim)  (PyTorch nn.Linear layout).
    bias:    (num_labels,)
    compute_dtype: matmul operand dtype (default bf16; None -> keep x dtype).
                   Accumulation / bias / output stay f32 / x.dtype.
    """
    B = x.shape[0]
    x2d = x.reshape(B, -1)                          # glue: flatten (plain JAX)
    dim = x2d.shape[1]
    num_labels = weight.shape[0]
    assert weight.shape == (num_labels, dim)
    assert bias.shape == (num_labels,)

    out_dtype = x2d.dtype
    cd = jnp.dtype(compute_dtype) if compute_dtype is not None else jnp.dtype(x2d.dtype)
    x_size = jnp.dtype(x2d.dtype).itemsize
    cd_size = cd.itemsize
    out_size = jnp.dtype(out_dtype).itemsize
    sub = max(_sublane(x_size), _sublane(out_size))

    # Lane-dense tiles.  Collapse N (single j tile) for typical probe sizes so
    # x is streamed from HBM exactly once; single K tile whenever dim fits.
    n_round = _round_up(num_labels, 128)
    k_round = _round_up(dim, 128)
    TN = n_round if n_round <= tn_max else 512
    TK = k_round if k_round <= tk_max else tk_max
    N_pad = _round_up(num_labels, TN)
    K_pad = _round_up(dim, TK)
    gn = N_pad // TN
    gk = K_pad // TK

    # Keep the (small, frozen) weight fully VMEM-resident when K is tiled.
    w_full_bytes = K_pad * N_pad * cd_size
    w_resident = (gn == 1) and (gk > 1) and (2 * w_full_bytes <= (24 << 20))

    # Pick TM against an explicit VMEM budget (conservative for v7x's 64 MiB).
    w_vmem = 2 * (w_full_bytes if w_resident else TK * TN * cd_size)
    b_vmem = 2 * TN * 4
    per_row = 2 * TK * x_size + 2 * TN * out_size + (TN * 4 if gk > 1 else 0)
    tm_budget = max(vmem_budget_bytes - w_vmem - b_vmem, 0) // per_row
    tm_budget = max(sub, (tm_budget // sub) * sub)
    TM = max(sub, min(tm, _round_up(B, sub), tm_budget))
    gm = pl.cdiv(B, TM)
    # v7x has two TensorCores: keep >= 2 parallel tiles when the batch allows.
    if gm * gn == 1 and B > sub:
        TM = _round_up(pl.cdiv(_round_up(B, sub), 2), sub)
        gm = pl.cdiv(B, TM)

    grid = (gm, gn, gk)

    # ---- glue (zero-cost when dim / num_labels are already aligned) -------
    if K_pad != dim:                      # zero K padding required for exactness
        x2d = jnp.pad(x2d, ((0, 0), (0, K_pad - dim)))
    w = weight.astype(cd)                 # one-time cast of the frozen weight
    if (N_pad, K_pad) != (num_labels, dim):
        w = jnp.pad(w, ((0, N_pad - num_labels), (0, K_pad - dim)))
    w_t = w.T                             # one-time transpose -> (K_pad, N_pad)
    b2d = jnp.pad(bias.astype(jnp.float32),
                  (0, N_pad - num_labels)).reshape(1, N_pad)

    if w_resident:
        w_spec = pl.BlockSpec((K_pad, N_pad), lambda i, j, k: (0, 0))
    else:
        w_spec = pl.BlockSpec((TK, TN), lambda i, j, k: (k, j))

    if gk == 1:
        kernel = functools.partial(_linear_kernel_single_k, compute_dtype=cd)
        scratch_shapes = []
    else:
        kernel = functools.partial(_linear_kernel_tiled_k, compute_dtype=cd,
                                   tk=TK, w_resident=w_resident)
        scratch_shapes = [pltpu.VMEM((TM, TN), jnp.float32)]

    vmem_est = (2 * TM * TK * x_size + w_vmem + b_vmem
                + 2 * TM * TN * out_size
                + (TM * TN * 4 if gk > 1 else 0))
    vmem_limit = int(min(max(vmem_est + (4 << 20), 16 << 20), 48 << 20))

    w_streams = 1 if (w_resident or (gn == 1 and gk == 1)) else gm
    cost = pl.CostEstimate(
        flops=2 * B * K_pad * N_pad,
        bytes_accessed=(gn * B * K_pad * x_size       # x (re-streamed per j tile)
                        + w_streams * w_full_bytes    # weight
                        + N_pad * 4                   # bias
                        + B * N_pad * out_size),      # logits
        transcendentals=0)

    out = pl.pallas_call(
        kernel,
        out_shape=jax.ShapeDtypeStruct((B, N_pad), out_dtype),
        grid_spec=pltpu.PrefetchScalarGridSpec(
            num_scalar_prefetch=0,
            grid=grid,
            in_specs=[
                pl.BlockSpec((TM, TK), lambda i, j, k: (i, k)),   # x
                w_spec,                                           # weight^T
                pl.BlockSpec((1, TN), lambda i, j, k: (0, j)),    # bias
            ],
            out_specs=pl.BlockSpec((TM, TN), lambda i, j, k: (i, j)),
            scratch_shapes=scratch_shapes,
        ),
        compiler_params=pltpu.CompilerParams(
            dimension_semantics=("parallel", "parallel", "arbitrary"),
            vmem_limit_bytes=vmem_limit),
        cost_estimate=cost,
    )(x2d, w_t, b2d)

    return out if N_pad == num_labels else out[:, :num_labels]


def init_linear_classifier_params(key, dim, num_labels):
    """Matches LinearClassifier.__init__: weight ~ N(0, 0.01), bias = 0."""
    w = 0.01 * jax.random.normal(key, (num_labels, dim), dtype=jnp.float32)
    b = jnp.zeros((num_labels,), dtype=jnp.float32)
    return w, b


if __name__ == "__main__":
    key = jax.random.PRNGKey(0)
    k_x, k_w, k_x2, k_w2 = jax.random.split(key, 4)

    # Small shapes: frozen features (B=2, C=4, L=8) -> dim = 32.
    B, C, L = 2, 4, 8
    dim = C * L
    num_labels = 16

    x = jax.random.normal(k_x, (B, C, L), dtype=jnp.float32)
    weight, bias = init_linear_classifier_params(k_w, dim, num_labels)
    ref = x.reshape(B, -1) @ weight.T + bias

    # Default path: bf16 compute, single-K kernel (no accumulator).
    out = jax.block_until_ready(linear_classifier_forward(x, weight, bias))
    assert out.shape == (B, num_labels)
    assert jnp.allclose(out, ref, atol=3e-2, rtol=3e-2)

    # f32 compute path (compute_dtype=None) should match the reference tightly.
    out_f32 = jax.block_until_ready(
        linear_classifier_forward(x, weight, bias, compute_dtype=None))
    assert jnp.allclose(out_f32, ref, atol=1e-5, rtol=1e-5)

    # Exercise the K-tiled + VMEM-resident-weight path (force small tk_max).
    B2, dim2 = 4, 256
    x2 = jax.random.normal(k_x2, (B2, dim2), dtype=jnp.float32)
    w2, b2 = init_linear_classifier_params(k_w2, dim2, num_labels)
    ref2 = x2 @ w2.T + b2
    out2 = jax.block_until_ready(
        linear_classifier_forward(x2, w2, b2, tk_max=128))
    assert out2.shape == (B2, num_labels)
    assert jnp.allclose(out2, ref2, atol=3e-2, rtol=3e-2)

    print("KERNEL_OK")
</pallas_src>

<mosaic_0001>
module attributes {stable_mosaic.version = 11 : i64} {
  func.func @_linear_kernel_single_k(%arg0: i32, %arg1: i32, %arg2: i32, %arg3: memref<8x128xf32, #tpu.memory_space<vmem>>, %arg4: memref<128x128xbf16, #tpu.memory_space<vmem>>, %arg5: memref<1x128xf32, #tpu.memory_space<vmem>>, %arg6: memref<8x128xf32, #tpu.memory_space<vmem>>) attributes {dimension_semantics = [#tpu.dimension_semantics<parallel>, #tpu.dimension_semantics<parallel>, #tpu.dimension_semantics<arbitrary>], iteration_bounds = array<i64: 1, 1, 1>, scalar_prefetch = 0 : i64, scratch_operands = 0 : i64, tpu.core_type = #tpu.core_type<tc>, window_params = [{transform_indices = @transform_0, window_bounds = array<i64: 8, 128>}, {transform_indices = @transform_1, window_bounds = array<i64: 128, 128>}, {transform_indices = @transform_2, window_bounds = array<i64: 1, 128>}, {transform_indices = @transform_3, window_bounds = array<i64: 8, 128>}]} {
    %c0 = arith.constant 0 : index
    %c0_0 = arith.constant 0 : index
    %0 = vector.load %arg3[%c0, %c0_0] : memref<8x128xf32, #tpu.memory_space<vmem>>, vector<8x128xf32>
    %1 = arith.truncf %0 : vector<8x128xf32> to vector<8x128xbf16>
    %c0_1 = arith.constant 0 : index
    %c0_2 = arith.constant 0 : index
    %2 = vector.load %arg4[%c0_1, %c0_2] : memref<128x128xbf16, #tpu.memory_space<vmem>>, vector<128x128xbf16>
    %cst = arith.constant dense<0.000000e+00> : vector<8x128xf32>
    %3 = tpu.matmul %1, %2, %cst {dimension_numbers = #tpu.dot_dimension_numbers<[1], [0], [0], [1], [0, 0, 1, 1], [], []>} : vector<8x128xbf16>, vector<128x128xbf16>, vector<8x128xf32> -> vector<8x128xf32>
    %c0_3 = arith.constant 0 : index
    %c0_4 = arith.constant 0 : index
    %4 = vector.load %arg5[%c0_3, %c0_4] : memref<1x128xf32, #tpu.memory_space<vmem>>, vector<1x128xf32>
    %5 = vector.broadcast %4 : vector<1x128xf32> to vector<8x128xf32>
    %6 = arith.addf %3, %5 : vector<8x128xf32>
    %c0_5 = arith.constant 0 : index
    %c0_6 = arith.constant 0 : index
    %7 = vector.load %arg6[%c0_5, %c0_6] : memref<8x128xf32, #tpu.memory_space<vmem>>, vector<8x128xf32>
    tpu.vector_store %arg6[%c0_5, %c0_6], %6 {strides = array<i32>} : memref<8x128xf32, #tpu.memory_space<vmem>>, vector<8x128xf32>,
    return
  }
  func.func @transform_0(%arg0: i32, %arg1: i32, %arg2: i32) -> (i32, i32) {
    %c0_i32 = arith.constant 0 : i32
    return %arg0, %arg2 : i32, i32
  }
  func.func @transform_1(%arg0: i32, %arg1: i32, %arg2: i32) -> (i32, i32) {
    %c0_i32 = arith.constant 0 : i32
    return %arg2, %arg1 : i32, i32
  }
  func.func @transform_2(%arg0: i32, %arg1: i32, %arg2: i32) -> (i32, i32) {
    %c0_i32 = arith.constant 0 : i32
    %c0_i32_0 = arith.constant 0 : i32
    return %c0_i32, %arg1 : i32, i32
  }
  func.func @transform_3(%arg0: i32, %arg1: i32, %arg2: i32) -> (i32, i32) {
    %c0_i32 = arith.constant 0 : i32
    return %arg0, %arg1 : i32, i32
  }
}

</mosaic_0001>

<llo_original>
// kernel: tpu_custom_call.1
$region0: #{tpu_custom_call.1}
  #allocation0 [shape = 'u32[]', space=smem, size = 0x4, offset = 0x4, fixed_abs, tag = 'smem constant byte address 0x4 - core index']
  #allocation1 [shape = 'u32[144,128]{1,0:T(1,128)}', space=vmem, size = 0x12000, scoped, tag = 'internal scratch']
  %s0 = inlined_call_operand.hbm [shape: f32[2,128], index: 0, kind: input, shape index: {}]
  %s1 = inlined_call_operand.hbm [shape: bf16[128,128], index: 1, kind: input, shape index: {}]
  %s2 = inlined_call_operand.vmem [shape: f32[1,128], index: 2, kind: input, shape index: {}]
  %s3 = inlined_call_operand.hbm [shape: f32[2,128], index: 3, kind: output, shape index: {}]
  %s4 = sld [smem:[#allocation0]]
  $region30: #{tpu_custom_call.1} parent=0
    _
  %s6 = ssub.s32 1, %s4
  %s7 = scalar_select 0, %s6, %s4
  $region1: #{tpu_custom_call.1} parent=0
    #allocation2 [shape = 'u8[4096]{0}', space=vmem, size = 0x1000, scoped, tag = 'input window, operand 0, single buffered']
    #allocation3 [shape = 's32[1]{0}', space=sflag, size = 0x4, scoped, tag = 'scoped memory for tpu_custom_call.1']
    #allocation4 [shape = 's32[1]{0}', space=sflag, size = 0x4, scoped, tag = 'scoped memory for tpu_custom_call.1']
    #allocation5 [shape = 'u8[32768]{0}', space=vmem, size = 0x8000, scoped, tag = 'input window, operand 1, single buffered']
    #allocation6 [shape = 's32[1]{0}', space=sflag, size = 0x4, scoped, tag = 'scoped memory for tpu_custom_call.1']
    #allocation7 [shape = 'u8[4096]{0}', space=vmem, size = 0x1000, scoped, tag = 'output window, operand 0, single buffered']
    %8 = vsyncpa [#allocation3], 0
    %9 = vsyncpa [#allocation6], 0
    %10 = vsyncpa [#allocation4], 0
    // Predicated region
    $region2: #{tpu_custom_call.1} parent=1 // pred_check
      _
    $region3: #{tpu_custom_call.1} parent=1 // pred_check_branch
      %12 = sbr.rel (0) target = $region5
    $region4: #{tpu_custom_call.1} parent=1 // pred_region
      %s14 = ssub.s32 128, 32
      %15 = vsyncadd [#allocation3], %s14
      %s16 = sshll.u32 [#allocation2], 4
      %s17 = int_to_ptr.vmem [resolvable:$true] %s16
      %22 = dma.hbm_to_vmem [thread:$0]  %s0, 32, %s17, [#allocation3], 32, 32, 2
    $region5: #{tpu_custom_call.1} parent=1 // pred_fallthru
      _
    // Predicated region
    $region6: #{tpu_custom_call.1} parent=1 // pred_check
      _
    $region7: #{tpu_custom_call.1} parent=1 // pred_check_branch
      %24 = sbr.rel (0) target = $region9
    $region8: #{tpu_custom_call.1} parent=1 // pred_region
      %s26 = ssub.s32 1024, 1024
      %27 = vsyncadd [#allocation6], %s26
      %s28 = sshll.u32 [#allocation5], 4
      %s29 = int_to_ptr.vmem [resolvable:$true] %s28
      %34 = dma.hbm_to_vmem [thread:$0]  %s1, 1024, %s29, [#allocation6], 64, 64, 4
    $region9: #{tpu_custom_call.1} parent=1 // pred_fallthru
      _
    // Predicated region
    $region10: #{tpu_custom_call.1} parent=1 // pred_check
      _
    $region11: #{tpu_custom_call.1} parent=1 // pred_check_branch
      %36 = sbr.rel (0) target = $region13
    $region12: #{tpu_custom_call.1} parent=1 // pred_region
      _
    $region13: #{tpu_custom_call.1} parent=1 // pred_fallthru
      _
    // Predicated region
    $region14: #{tpu_custom_call.1} parent=1 // pred_check
      _
    $region15: #{tpu_custom_call.1} parent=1 // pred_check_branch
      %38 = sbr.rel (0) target = $region17
    $region16: #{tpu_custom_call.1} parent=1 // pred_region
      %39 = dma.done [#allocation3], 128
    $region17: #{tpu_custom_call.1} parent=1 // pred_fallthru
      _
    // Predicated region
    $region18: #{tpu_custom_call.1} parent=1 // pred_check
      _
    $region19: #{tpu_custom_call.1} parent=1 // pred_check_branch
      %41 = sbr.rel (0) target = $region21
    $region20: #{tpu_custom_call.1} parent=1 // pred_region
      %42 = dma.done [#allocation6], 1024
    $region21: #{tpu_custom_call.1} parent=1 // pred_fallthru
      _
    %v44 = vld [vmem:[#allocation2] sm:$0xff]
    %v45 = vpack.c.bf16 %v44, %v44
    %v46 = vld [vmem:[#allocation5] sm:$0xf]
    %v47 = vld [vmem:[#allocation5 + $0x4] sm:$0xf]
    %v48 = vld [vmem:[#allocation5 + $0x8] sm:$0xf]
    %v49 = vld [vmem:[#allocation5 + $0xc] sm:$0xf]
    %v50 = vld [vmem:[#allocation5 + $0x10] sm:$0xf]
    %v51 = vld [vmem:[#allocation5 + $0x14] sm:$0xf]
    %v52 = vld [vmem:[#allocation5 + $0x18] sm:$0xf]
    %v53 = vld [vmem:[#allocation5 + $0x1c] sm:$0xf]
    %v54 = vld [vmem:[#allocation5 + $0x20] sm:$0xf]
    %v55 = vld [vmem:[#allocation5 + $0x24] sm:$0xf]
    %v56 = vld [vmem:[#allocation5 + $0x28] sm:$0xf]
    %v57 = vld [vmem:[#allocation5 + $0x2c] sm:$0xf]
    %v58 = vld [vmem:[#allocation5 + $0x30] sm:$0xf]
    %v59 = vld [vmem:[#allocation5 + $0x34] sm:$0xf]
    %v60 = vld [vmem:[#allocation5 + $0x38] sm:$0xf]
    %v61 = vld [vmem:[#allocation5 + $0x3c] sm:$0xf]
    %v62 = vld [vmem:[%s2] sm:$0x1]
    %v64 = vlaneseq
    %v65 = vshrl.u32 %v64, 7
    %v66 = vsub.s32 0, %v65
    %v67 = vrot.slane %v62, %v66
    %v85 = vunpack.c.l.b16 %v46
    %v86 = vunpack.c.l.b16 %v47
    %v87 = vunpack.c.l.b16 %v48
    %v88 = vunpack.c.l.b16 %v49
    %v89 = vunpack.c.l.b16 %v50
    %v90 = vunpack.c.l.b16 %v51
    %v91 = vunpack.c.l.b16 %v52
    %v92 = vunpack.c.l.b16 %v53
    %v93 = vunpack.c.l.b16 %v54
    %v94 = vunpack.c.l.b16 %v55
    %v95 = vunpack.c.l.b16 %v56
    %v96 = vunpack.c.l.b16 %v57
    %v97 = vunpack.c.l.b16 %v58
    %v98 = vunpack.c.l.b16 %v59
    %v99 = vunpack.c.l.b16 %v60
    %v100 = vunpack.c.l.b16 %v61
    %v101 = vpack.c.b16 %v86, %v85
    %v102 = vpack.c.b16 %v88, %v87
    %v103 = vpack.c.b16 %v90, %v89
    %v104 = vpack.c.b16 %v92, %v91
    %v105 = vpack.c.b16 %v94, %v93
    %v106 = vpack.c.b16 %v96, %v95
    %v107 = vpack.c.b16 %v98, %v97
    %v108 = vpack.c.b16 %v100, %v99
    %117 = vmatprep.subr.bf16.mxu0 0
    %118 = vmatpush1.bf16.msra.mxu0 %v101
    %119 = vmatprep.subr.bf16.mxu0 0
    %120 = vmatpush1.bf16.msra.mxu0 %v102
    %121 = vmatprep.subr.bf16.mxu0 0
    %122 = vmatpush1.bf16.msra.mxu0 %v103
    %123 = vmatprep.subr.bf16.mxu0 0
    %124 = vmatpush1.bf16.msra.mxu0 %v104
    %125 = vmatprep.subr.bf16.mxu0 0
    %126 = vmatpush1.bf16.msra.mxu0 %v105
    %127 = vmatprep.subr.bf16.mxu0 0
    %128 = vmatpush1.bf16.msra.mxu0 %v106
    %129 = vmatprep.subr.bf16.mxu0 0
    %130 = vmatpush1.bf16.msra.mxu0 %v107
    %131 = vmatprep.subr.bf16.mxu0 0
    %132 = vmatpush1.bf16.msra.mxu0 %v108
    %133 = vmatprep.subr.bf16.mxu0 0
    %134 = vmatpush1.bf16.msra.mxu0 0
    %135 = vmatprep.subr.bf16.mxu0 0
    %136 = vmatpush1.bf16.msra.mxu0 0
    %137 = vmatprep.subr.bf16.mxu0 0
    %138 = vmatpush1.bf16.msra.mxu0 0
    %139 = vmatprep.subr.bf16.mxu0 0
    %140 = vmatpush1.bf16.msra.mxu0 0
    %141 = vmatprep.subr.bf16.mxu0 0
    %142 = vmatpush1.bf16.msra.mxu0 0
    %143 = vmatprep.subr.bf16.mxu0 0
    %144 = vmatpush1.bf16.msra.mxu0 0
    %145 = vmatprep.subr.bf16.mxu0 0
    %146 = vmatpush1.bf16.msra.mxu0 0
    %147 = vmatprep.subr.bf16.mxu0 0
    %148 = vmatpush1.bf16.msra.mxu0 0
    %149 = vmatprep.mubr.bf16.mxu0 0
    %150 = vmatmul.mubr.bf16.gmra.mrb[0].mxu0 %v45
    %v151 = vpop.f32.mrb[0].mxu0
    %v152 = vadd.f32 %v67, %v151
    %v153 = vpop.f32.mrb[0].mxu0
    %v154 = vpop.f32.mrb[0].mxu0
    %v155 = vpop.f32.mrb[0].mxu0
    %156 = vdwg.mxu0
    %157 = vst [vmem:[#allocation7] sm:$0xff] %v152
    // Predicated region
    $region22: #{tpu_custom_call.1} parent=1 // pred_check
      _
    $region23: #{tpu_custom_call.1} parent=1 // pred_check_branch
      %159 = sbr.rel (0) target = $region25
    $region24: #{tpu_custom_call.1} parent=1 // pred_region
      %s161 = ssub.s32 128, 32
      %162 = vsyncadd [#allocation4], %s161
      %s163 = sshll.u32 [#allocation7], 4
      %s164 = int_to_ptr.vmem [resolvable:$true] %s163
      %169 = dma.vmem_to_hbm [thread:$0]  %s164, 32, %s3, [#allocation4], 32, 32, 2
    $region25: #{tpu_custom_call.1} parent=1 // pred_fallthru
      _
    // Predicated region
    $region26: #{tpu_custom_call.1} parent=1 // pred_check
      _
    $region27: #{tpu_custom_call.1} parent=1 // pred_check_branch
      %171 = sbr.rel (0) target = $region29
    $region28: #{tpu_custom_call.1} parent=1 // pred_region
      %172 = dma.done [#allocation4], 128
    $region29: #{tpu_custom_call.1} parent=1 // pred_fallthru
      _
    %173 = vsyncpa [#allocation3], 1
    %174 = vsyncpa [#allocation6], 1
    %175 = vsyncpa [#allocation4], 1

</llo_original>
